<compile_context>
chip_gen: v7x
topology: tpu7x:2x2x1
jax: 0.10.0
libtpu: 0.0.40
codegen_flags: <defaults>
</compile_context>

<pallas_src>
import jax
import jax.numpy as jnp
from jax import lax
from jax.experimental import pallas as pl
from jax.experimental.pallas import tpu as pltpu


def _head_kernel(x_ref, wqkv_ref, o_ref):
    # x_ref block:    (BB*T, C)   flattened rows for this batch block
    # wqkv_ref block: (3, C, H)   stacked q|k|v projection weights
    # o_ref block:    (BB, T*H)   lane-dense output slab
    M, C = x_ref.shape
    BB = o_ref.shape[0]
    H = wqkv_ref.shape[2]
    T = M // BB
    in_dtype = x_ref.dtype

    x2d = x_ref[...]  # (BB*T, C) — already 2-D, no in-kernel repack

    # QKV projection: three small MXU matmuls against tile-aligned weight views
    # (static first-axis views are free).  Native-dtype operands, f32 accumulate.
    q = jnp.dot(x2d, wqkv_ref[0], preferred_element_type=jnp.float32)  # (BB*T, H)
    k = jnp.dot(x2d, wqkv_ref[1], preferred_element_type=jnp.float32)
    v = jnp.dot(x2d, wqkv_ref[2], preferred_element_type=jnp.float32)

    # Re-introduce the batch axis for per-sequence attention; cast back to the
    # input dtype so the second-level matmuls feed the MXU's native (e.g. bf16)
    # input path (no-op for f32 inputs).
    q = q.reshape(BB, T, H).astype(in_dtype)
    k = k.reshape(BB, T, H).astype(in_dtype)
    v = v.reshape(BB, T, H).astype(in_dtype)

    # Scaled scores: contract the last dims of q and k directly (no transposed
    # copy of k).  Scale by C**-0.5 to match the PyTorch reference.
    wei = jnp.einsum("bqd,bkd->bqk", q, k,
                     preferred_element_type=jnp.float32) * (C ** -0.5)  # (BB,T,T)

    # Causal (lower-triangular) mask == tril[:T, :T]; the diagonal is always
    # kept, so no row is ever fully -inf.
    row = lax.broadcasted_iota(jnp.int32, (T, T), 0)
    col = lax.broadcasted_iota(jnp.int32, (T, T), 1)
    wei = jnp.where((col <= row)[None, :, :], wei, -jnp.inf)

    # Numerically stable softmax.  Exact divide (not pl.reciprocal(approx=True))
    # so the f32 path stays within ~1e-6 of the reference.
    wei_max = jnp.max(wei, axis=-1, keepdims=True)
    e = jnp.exp(wei - wei_max)
    denom = jnp.sum(e, axis=-1, keepdims=True)
    p = e / denom

    # TODO(synk): nn.Dropout(dropout) on the probabilities is identity in eval
    # mode; training-time stochastic dropout (pltpu.prng_*) is not applied here.

    # TODO(synk): for large T, switch to flash-style KV tiling (online softmax,
    # K-tile grid axis marked "arbitrary", running m/l/acc in VMEM scratch)
    # instead of materializing the full (T, T) score matrix; re-derive block
    # sizes against v7x's 64 MiB VMEM (half of v5e/v6e).
    out = jnp.einsum("bqk,bkd->bqd", p.astype(in_dtype), v,
                     preferred_element_type=jnp.float32)               # (BB,T,H)

    # Lane-dense store: (BB, T*H) — T*H = 128 at the module's shapes, so this is
    # an unmasked full-vreg-width store instead of a 16/128-lane masked one.
    o_ref[...] = out.reshape(BB, T * H).astype(o_ref.dtype)


def fuse_qkv_weights(w_query, w_key, w_value):
    """Stack the three (C, H) projection weights once as (3, C, H), q|k|v order.

    Hoisted out of head_forward so it is not an extra HBM round trip per call
    (in a real model the stacked weight would be stored this way).
    """
    return jnp.stack([w_query, w_key, w_value], axis=0)


def _vmem_limit_bytes(batch_block, T, C, H, itemsize):
    """Rough scoped-VMEM budget for the chosen block sizes, with headroom."""
    x_blk = batch_block * T * C * itemsize
    o_blk = batch_block * T * H * itemsize
    w_blk = 3 * C * H * itemsize
    f32 = 4
    # q/k/v, wei/e/p (T*T each), out accumulator — all f32 intermediates.
    interm = batch_block * T * (3 * H + 3 * T + H) * f32
    est = 2 * (x_blk + o_blk) + w_blk + interm          # double-buffered blocks
    # 4x margin; floor at 32 MiB (>= v6e/v7x default), cap well under v7x's
    # 64 MiB physical VMEM so a block that fits v6e cannot silently OOM there.
    return int(min(max(4 * est, 32 << 20), 48 << 20))


def head_forward(x, w_qkv, *, batch_block=None):
    """x: (B, T, C); w_qkv: (3, C, head_size) from fuse_qkv_weights.

    Returns (B, T, head_size).

    batch_block: rows of the batch handled per grid step.  Default B (grid=1),
    which is optimal on single-TensorCore v5e/v6e; on v7x pass B//2 so each of
    the two TensorCores gets exactly one 'parallel' step.
    """
    B, T, C = x.shape
    H = w_qkv.shape[-1]

    if batch_block is None:
        batch_block = B
    assert B % batch_block == 0, (B, batch_block)
    grid = (B // batch_block,)

    # Wrapper-side flatten (free for a contiguous (B, T, C) array): the kernel
    # sees a clean 2-D (rows, C) block for the QKV projection.
    x2d = x.reshape(B * T, C)

    out2d = pl.pallas_call(
        _head_kernel,
        out_shape=jax.ShapeDtypeStruct((B, T * H), x.dtype),
        grid_spec=pltpu.PrefetchScalarGridSpec(
            num_scalar_prefetch=0,
            grid=grid,
            in_specs=[
                pl.BlockSpec((batch_block * T, C), lambda b: (b, 0)),   # x rows
                pl.BlockSpec((3, C, H), lambda b: (0, 0, 0)),           # stacked W_qkv
            ],
            out_specs=pl.BlockSpec((batch_block, T * H), lambda b: (b, 0)),
        ),
        compiler_params=pltpu.CompilerParams(
            dimension_semantics=("parallel",),
            vmem_limit_bytes=_vmem_limit_bytes(batch_block, T, C, H,
                                               x.dtype.itemsize),
        ),
    )(x2d, w_qkv)

    return out2d.reshape(B, T, H)


def reference_head(x, w_key, w_query, w_value):
    """Pure-JAX reference mirroring the PyTorch forward (eval mode), in f32."""
    x = x.astype(jnp.float32)
    w_key, w_query, w_value = (w.astype(jnp.float32) for w in (w_key, w_query, w_value))
    B, T, C = x.shape
    k = x @ w_key
    q = x @ w_query
    v = x @ w_value
    wei = (q @ jnp.swapaxes(k, -2, -1)) * (C ** -0.5)
    tril = jnp.tril(jnp.ones((T, T), dtype=bool))
    wei = jnp.where(tril, wei, -jnp.inf)
    wei = jax.nn.softmax(wei, axis=-1)
    return wei @ v


if __name__ == "__main__":
    # Small shapes consistent with the module: B=2, T=block_size=8, C=n_embd=32,
    # head_size=16.
    B, T, C, H = 2, 8, 32, 16

    key = jax.random.PRNGKey(0)
    kx, kk, kq, kv = jax.random.split(key, 4)

    x = jax.random.normal(kx, (B, T, C), dtype=jnp.float32)
    # Deterministic init mimicking nn.Linear's uniform(-1/sqrt(C), 1/sqrt(C)),
    # stored as (C, H) == torch weight.T so that y = x @ W.
    bound = 1.0 / (C ** 0.5)
    w_key = jax.random.uniform(kk, (C, H), jnp.float32, -bound, bound)
    w_query = jax.random.uniform(kq, (C, H), jnp.float32, -bound, bound)
    w_value = jax.random.uniform(kv, (C, H), jnp.float32, -bound, bound)

    ref = reference_head(x, w_key, w_query, w_value)

    # Stack q|k|v projection weights once (hoisted out of the per-call path).
    w_qkv = fuse_qkv_weights(w_query, w_key, w_value)

    # --- f32 path (tight check; softmax now uses an exact divide) -----------
    out = head_forward(x, w_qkv)
    out = jax.block_until_ready(out)
    assert out.shape == (B, T, H), out.shape
    err = float(jnp.max(jnp.abs(out - ref)))
    assert jnp.allclose(out, ref, atol=2e-3, rtol=2e-3), err

    # --- bf16 path (native MXU input dtype; loose check vs f32 reference) ---
    out_bf16 = head_forward(x.astype(jnp.bfloat16), w_qkv.astype(jnp.bfloat16))
    out_bf16 = jax.block_until_ready(out_bf16)
    assert out_bf16.shape == (B, T, H), out_bf16.shape
    err_bf16 = float(jnp.max(jnp.abs(out_bf16.astype(jnp.float32) - ref)))
    assert err_bf16 < 6e-2, err_bf16

    print("KERNEL_OK")
</pallas_src>

<mosaic_0001>
module attributes {stable_mosaic.version = 11 : i64} {
  func.func @_head_kernel(%arg0: i32, %arg1: memref<16x32xf32, #tpu.memory_space<vmem>>, %arg2: memref<3x32x16xf32, #tpu.memory_space<vmem>>, %arg3: memref<2x128xf32, #tpu.memory_space<vmem>>) attributes {dimension_semantics = [#tpu.dimension_semantics<parallel>], iteration_bounds = array<i64: 1>, scalar_prefetch = 0 : i64, scratch_operands = 0 : i64, tpu.core_type = #tpu.core_type<tc>, window_params = [{transform_indices = @transform_0, window_bounds = array<i64: 16, 32>}, {pipeline_mode = #tpu.pipeline_mode<synchronous>, transform_indices = @transform_1, window_bounds = array<i64: 3, 32, 16>}, {transform_indices = @transform_2, window_bounds = array<i64: 2, 128>}]} {
    %c0 = arith.constant 0 : index
    %c0_0 = arith.constant 0 : index
    %0 = vector.load %arg1[%c0, %c0_0] : memref<16x32xf32, #tpu.memory_space<vmem>>, vector<16x32xf32>
    %c0_1 = arith.constant 0 : index
    %c0_2 = arith.constant 0 : index
    %c0_3 = arith.constant 0 : index
    %1 = vector.load %arg2[%c0_1, %c0_2, %c0_3] : memref<3x32x16xf32, #tpu.memory_space<vmem>>, vector<1x32x16xf32>
    %2 = vector.shape_cast %1 : vector<1x32x16xf32> to vector<32x16xf32>
    %cst = arith.constant dense<0.000000e+00> : vector<16x16xf32>
    %3 = tpu.matmul %0, %2, %cst {dimension_numbers = #tpu.dot_dimension_numbers<[1], [0], [0], [1], [0, 0, 1, 1], [], []>} : vector<16x32xf32>, vector<32x16xf32>, vector<16x16xf32> -> vector<16x16xf32>
    %c1 = arith.constant 1 : index
    %c0_4 = arith.constant 0 : index
    %c0_5 = arith.constant 0 : index
    %4 = vector.load %arg2[%c1, %c0_4, %c0_5] : memref<3x32x16xf32, #tpu.memory_space<vmem>>, vector<1x32x16xf32>
    %5 = vector.shape_cast %4 : vector<1x32x16xf32> to vector<32x16xf32>
    %cst_6 = arith.constant dense<0.000000e+00> : vector<16x16xf32>
    %6 = tpu.matmul %0, %5, %cst_6 {dimension_numbers = #tpu.dot_dimension_numbers<[1], [0], [0], [1], [0, 0, 1, 1], [], []>} : vector<16x32xf32>, vector<32x16xf32>, vector<16x16xf32> -> vector<16x16xf32>
    %c2 = arith.constant 2 : index
    %c0_7 = arith.constant 0 : index
    %c0_8 = arith.constant 0 : index
    %7 = vector.load %arg2[%c2, %c0_7, %c0_8] : memref<3x32x16xf32, #tpu.memory_space<vmem>>, vector<1x32x16xf32>
    %8 = vector.shape_cast %7 : vector<1x32x16xf32> to vector<32x16xf32>
    %cst_9 = arith.constant dense<0.000000e+00> : vector<16x16xf32>
    %9 = tpu.matmul %0, %8, %cst_9 {dimension_numbers = #tpu.dot_dimension_numbers<[1], [0], [0], [1], [0, 0, 1, 1], [], []>} : vector<16x32xf32>, vector<32x16xf32>, vector<16x16xf32> -> vector<16x16xf32>
    %10 = vector.shape_cast %3 : vector<16x16xf32> to vector<2x8x16xf32>
    %11 = vector.shape_cast %6 : vector<16x16xf32> to vector<2x8x16xf32>
    %12 = vector.shape_cast %9 : vector<16x16xf32> to vector<2x8x16xf32>
    "tpu.trace_start"() <{level = 10 : i32, message = "bqd,bkd->bqk"}> : () -> ()
    %cst_10 = arith.constant dense<0.000000e+00> : vector<2x8x8xf32>
    %13 = tpu.matmul %10, %11, %cst_10 {dimension_numbers = #tpu.dot_dimension_numbers<[2], [2], [1], [1], [0, 0, 0, 1, 1, 1], [0], [0]>} : vector<2x8x16xf32>, vector<2x8x16xf32>, vector<2x8x8xf32> -> vector<2x8x8xf32>
    "tpu.trace_stop"() : () -> ()
    %cst_11 = arith.constant 0.176776692 : f32
    %14 = vector.broadcast %cst_11 : f32 to vector<2x8x8xf32>
    %15 = arith.mulf %13, %14 : vector<2x8x8xf32>
    %16 = tpu.iota {dimensions = array<i32: 0>} : vector<8x8xi32>
    %17 = tpu.iota {dimensions = array<i32: 1>} : vector<8x8xi32>
    %18 = arith.cmpi sle, %17, %16 : vector<8x8xi32>
    %19 = vector.shape_cast %18 : vector<8x8xi1> to vector<1x8x8xi1>
    %cst_12 = arith.constant 0xFF800000 : f32
    %20 = vector.shape_cast %19 : vector<1x8x8xi1> to vector<1x8x8xi1>
    %21 = vector.broadcast %20 : vector<1x8x8xi1> to vector<2x8x8xi1>
    %22 = vector.broadcast %cst_12 : f32 to vector<2x8x8xf32>
    %23 = arith.select %21, %15, %22 : vector<2x8x8xi1>, vector<2x8x8xf32>
    %cst_13 = arith.constant dense<0xFF800000> : vector<2x8xf32>
    %24 = vector.multi_reduction <maximumf>, %23, %cst_13 [2] : vector<2x8x8xf32> to vector<2x8xf32>
    %25 = vector.shape_cast %24 : vector<2x8xf32> to vector<2x8x1xf32>
    %26 = vector.broadcast %25 : vector<2x8x1xf32> to vector<2x8x8xf32>
    %27 = arith.subf %23, %26 : vector<2x8x8xf32>
    %28 = math.exp %27 : vector<2x8x8xf32>
    %cst_14 = arith.constant dense<0.000000e+00> : vector<2x8xf32>
    %29 = vector.multi_reduction <add>, %28, %cst_14 [2] : vector<2x8x8xf32> to vector<2x8xf32>
    %30 = vector.shape_cast %29 : vector<2x8xf32> to vector<2x8x1xf32>
    %31 = vector.broadcast %30 : vector<2x8x1xf32> to vector<2x8x8xf32>
    %32 = arith.divf %28, %31 : vector<2x8x8xf32>
    "tpu.trace_start"() <{level = 10 : i32, message = "bqk,bkd->bqd"}> : () -> ()
    %cst_15 = arith.constant dense<0.000000e+00> : vector<2x8x16xf32>
    %33 = tpu.matmul %32, %12, %cst_15 {dimension_numbers = #tpu.dot_dimension_numbers<[2], [1], [1], [2], [0, 0, 0, 1, 1, 2], [0], [0]>} : vector<2x8x8xf32>, vector<2x8x16xf32>, vector<2x8x16xf32> -> vector<2x8x16xf32>
    "tpu.trace_stop"() : () -> ()
    %34 = vector.shape_cast %33 : vector<2x8x16xf32> to vector<2x128xf32>
    %c0_16 = arith.constant 0 : index
    %c0_17 = arith.constant 0 : index
    %35 = vector.load %arg3[%c0_16, %c0_17] : memref<2x128xf32, #tpu.memory_space<vmem>>, vector<2x128xf32>
    tpu.vector_store %arg3[%c0_16, %c0_17], %34 {strides = array<i32>} : memref<2x128xf32, #tpu.memory_space<vmem>>, vector<2x128xf32>,
    return
  }
  func.func @transform_0(%arg0: i32) -> (i32, i32) {
    %c0_i32 = arith.constant 0 : i32
    %c0_i32_0 = arith.constant 0 : i32
    return %arg0, %c0_i32 : i32, i32
  }
  func.func @transform_1(%arg0: i32) -> (i32, i32, i32) {
    %c0_i32 = arith.constant 0 : i32
    %c0_i32_0 = arith.constant 0 : i32
    %c0_i32_1 = arith.constant 0 : i32
    %c0_i32_2 = arith.constant 0 : i32
    return %c0_i32, %c0_i32_0, %c0_i32_1 : i32, i32, i32
  }
  func.func @transform_2(%arg0: i32) -> (i32, i32) {
    %c0_i32 = arith.constant 0 : i32
    %c0_i32_0 = arith.constant 0 : i32
    return %arg0, %c0_i32 : i32, i32
  }
}

</mosaic_0001>

<llo_original>
// kernel: tpu_custom_call.1
$region0: #{tpu_custom_call.1}
  #allocation0 [shape = 'u32[]', space=smem, size = 0x4, offset = 0x4, fixed_abs, tag = 'smem constant byte address 0x4 - core index']
  #allocation1 [shape = 'u32[144,128]{1,0:T(1,128)}', space=vmem, size = 0x12000, scoped, tag = 'internal scratch']
  %s0 = inlined_call_operand.vmem [shape: f32[16,32], index: 0, kind: input, shape index: {}]
  %s1 = inlined_call_operand.vmem [shape: f32[3,32,16], index: 1, kind: input, shape index: {}]
  %s2 = inlined_call_operand.hbm [shape: f32[2,128], index: 2, kind: output, shape index: {}]
  %s3 = sld [smem:[#allocation0]]
  $region18: #{tpu_custom_call.1} parent=0
    _
  %s5 = ssub.s32 1, %s3
  %s6 = scalar_select 0, %s5, %s3
  $region1: #{tpu_custom_call.1} parent=0
    #allocation2 [shape = 'u8[1024]{0}', space=vmem, size = 0x400, scoped, tag = 'output window, operand 0, single buffered']
    #allocation3 [shape = 's32[1]{0}', space=sflag, size = 0x4, scoped, tag = 'scoped memory for tpu_custom_call.1']
    %7 = vsyncpa [#allocation3], 0
    // Predicated region
    $region2: #{tpu_custom_call.1} parent=1 // pred_check
      _
    $region3: #{tpu_custom_call.1} parent=1 // pred_check_branch
      %9 = sbr.rel (0) target = $region5
    $region4: #{tpu_custom_call.1} parent=1 // pred_region
      _
    $region5: #{tpu_custom_call.1} parent=1 // pred_fallthru
      _
    // Predicated region
    $region6: #{tpu_custom_call.1} parent=1 // pred_check
      _
    $region7: #{tpu_custom_call.1} parent=1 // pred_check_branch
      %11 = sbr.rel (0) target = $region9
    $region8: #{tpu_custom_call.1} parent=1 // pred_region
      _
    $region9: #{tpu_custom_call.1} parent=1 // pred_fallthru
      _
    %v12 = vld [vmem:[%s0] sm:$0xff]
    %v13 = vld [vmem:[%s0 + $0x8] sm:$0xff]
    %v14 = vld [vmem:[%s1] sm:$0xff]
    %v15 = vld [vmem:[%s1 + $0x8] sm:$0xff]
    %v16 = vld [vmem:[%s1 + $0x10] sm:$0xff]
    %v17 = vld [vmem:[%s1 + $0x18] sm:$0xff]
    %vm18 = vcmask 261120
    %v20 = vsel %vm18, %v12, 0
    %v23 = vsel %vm18, %v13, 0
    %25 = vmatprep.subr.mxu0 0.0
    %26 = vmatpush1.msra.mxu0 %v14
    %27 = vmatprep.subr.mxu0 0.0
    %28 = vmatpush1.msra.mxu0 %v15
    %29 = vmatprep.subr.mxu0 0.0
    %30 = vmatpush1.msra.mxu0 %v16
    %31 = vmatprep.subr.mxu0 0.0
    %32 = vmatpush1.msra.mxu0 %v17
    %33 = vmatprep.subr.mxu0 0.0
    %34 = vmatpush1.msra.mxu0 0.0
    %35 = vmatprep.subr.mxu0 0.0
    %36 = vmatpush1.msra.mxu0 0.0
    %37 = vmatprep.subr.mxu0 0.0
    %38 = vmatpush1.msra.mxu0 0.0
    %39 = vmatprep.subr.mxu0 0.0
    %40 = vmatpush1.msra.mxu0 0.0
    %41 = vmatprep.subr.mxu0 0.0
    %42 = vmatpush1.msra.mxu0 0.0
    %43 = vmatprep.subr.mxu0 0.0
    %44 = vmatpush1.msra.mxu0 0.0
    %45 = vmatprep.subr.mxu0 0.0
    %46 = vmatpush1.msra.mxu0 0.0
    %47 = vmatprep.subr.mxu0 0.0
    %48 = vmatpush1.msra.mxu0 0.0
    %49 = vmatprep.subr.mxu0 0.0
    %50 = vmatpush1.msra.mxu0 0.0
    %51 = vmatprep.subr.mxu0 0.0
    %52 = vmatpush1.msra.mxu0 0.0
    %53 = vmatprep.subr.mxu0 0.0
    %54 = vmatpush1.msra.mxu0 0.0
    %55 = vmatprep.subr.mxu0 0.0
    %56 = vmatpush1.msra.mxu0 0.0
    %57 = vmatprep.subr.mxu0 0.0
    %58 = vmatpush1.msra.mxu0 0.0
    %59 = vmatprep.subr.mxu0 0.0
    %60 = vmatpush1.msra.mxu0 0.0
    %61 = vmatprep.subr.mxu0 0.0
    %62 = vmatpush1.msra.mxu0 0.0
    %63 = vmatprep.subr.mxu0 0.0
    %64 = vmatpush1.msra.mxu0 0.0
    %65 = vmatprep.subr.mxu0 0.0
    %66 = vmatpush1.msra.mxu0 0.0
    %67 = vmatprep.subr.mxu0 0.0
    %68 = vmatpush1.msra.mxu0 0.0
    %69 = vmatprep.subr.mxu0 0.0
    %70 = vmatpush1.msra.mxu0 0.0
    %71 = vmatprep.subr.mxu0 0.0
    %72 = vmatpush1.msra.mxu0 0.0
    %73 = vmatprep.subr.mxu0 0.0
    %74 = vmatpush1.msra.mxu0 0.0
    %75 = vmatprep.subr.mxu0 0.0
    %76 = vmatpush1.msra.mxu0 0.0
    %77 = vmatprep.subr.mxu0 0.0
    %78 = vmatpush1.msra.mxu0 0.0
    %79 = vmatprep.subr.mxu0 0.0
    %80 = vmatpush1.msra.mxu0 0.0
    %81 = vmatprep.subr.mxu0 0.0
    %82 = vmatpush1.msra.mxu0 0.0
    %83 = vmatprep.subr.mxu0 0.0
    %84 = vmatpush1.msra.mxu0 0.0
    %85 = vmatprep.subr.mxu0 0.0
    %86 = vmatpush1.msra.mxu0 0.0
    %87 = vmatprep.subr.mxu0 0.0
    %88 = vmatpush1.msra.mxu0 0.0
    %89 = vmatprep.mubr.f32.mxu0 0.0
    %90 = vmatmul.mubr.f32.gmra.mrb[0].mxu0 %v20
    %v91 = vpop.f32.mrb[0].mxu0
    %v92 = vadd.f32 0.0, %v91
    %v93 = vpop.f32.mrb[0].mxu0
    %94 = vmatprep.mubr.f32.mxu0 0.0
    %95 = vmatmul.mubr.f32.gmra.mrb[0].mxu0 %v23
    %v96 = vpop.f32.mrb[0].mxu0
    %v97 = vadd.f32 0.0, %v96
    %v98 = vpop.f32.mrb[0].mxu0
    %99 = vdwg.mxu0
    %s100 = scalar_lea.vmem %s1, 32
    %v101 = vld [vmem:[%s100] sm:$0xff]
    %v102 = vld [vmem:[%s100 + $0x8] sm:$0xff]
    %v103 = vld [vmem:[%s100 + $0x10] sm:$0xff]
    %v104 = vld [vmem:[%s100 + $0x18] sm:$0xff]
    %105 = vmatprep.subr.mxu0 0.0
    %106 = vmatpush1.msra.mxu0 %v101
    %107 = vmatprep.subr.mxu0 0.0
    %108 = vmatpush1.msra.mxu0 %v102
    %109 = vmatprep.subr.mxu0 0.0
    %110 = vmatpush1.msra.mxu0 %v103
    %111 = vmatprep.subr.mxu0 0.0
    %112 = vmatpush1.msra.mxu0 %v104
    %113 = vmatprep.subr.mxu0 0.0
    %114 = vmatpush1.msra.mxu0 0.0
    %115 = vmatprep.subr.mxu0 0.0
    %116 = vmatpush1.msra.mxu0 0.0
    %117 = vmatprep.subr.mxu0 0.0
    %118 = vmatpush1.msra.mxu0 0.0
    %119 = vmatprep.subr.mxu0 0.0
    %120 = vmatpush1.msra.mxu0 0.0
    %121 = vmatprep.subr.mxu0 0.0
    %122 = vmatpush1.msra.mxu0 0.0
    %123 = vmatprep.subr.mxu0 0.0
    %124 = vmatpush1.msra.mxu0 0.0
    %125 = vmatprep.subr.mxu0 0.0
    %126 = vmatpush1.msra.mxu0 0.0
    %127 = vmatprep.subr.mxu0 0.0
    %128 = vmatpush1.msra.mxu0 0.0
    %129 = vmatprep.subr.mxu0 0.0
    %130 = vmatpush1.msra.mxu0 0.0
    %131 = vmatprep.subr.mxu0 0.0
    %132 = vmatpush1.msra.mxu0 0.0
    %133 = vmatprep.subr.mxu0 0.0
    %134 = vmatpush1.msra.mxu0 0.0
    %135 = vmatprep.subr.mxu0 0.0
    %136 = vmatpush1.msra.mxu0 0.0
    %137 = vmatprep.subr.mxu0 0.0
    %138 = vmatpush1.msra.mxu0 0.0
    %139 = vmatprep.subr.mxu0 0.0
    %140 = vmatpush1.msra.mxu0 0.0
    %141 = vmatprep.subr.mxu0 0.0
    %142 = vmatpush1.msra.mxu0 0.0
    %143 = vmatprep.subr.mxu0 0.0
    %144 = vmatpush1.msra.mxu0 0.0
    %145 = vmatprep.subr.mxu0 0.0
    %146 = vmatpush1.msra.mxu0 0.0
    %147 = vmatprep.subr.mxu0 0.0
    %148 = vmatpush1.msra.mxu0 0.0
    %149 = vmatprep.subr.mxu0 0.0
    %150 = vmatpush1.msra.mxu0 0.0
    %151 = vmatprep.subr.mxu0 0.0
    %152 = vmatpush1.msra.mxu0 0.0
    %153 = vmatprep.subr.mxu0 0.0
    %154 = vmatpush1.msra.mxu0 0.0
    %155 = vmatprep.subr.mxu0 0.0
    %156 = vmatpush1.msra.mxu0 0.0
    %157 = vmatprep.subr.mxu0 0.0
    %158 = vmatpush1.msra.mxu0 0.0
    %159 = vmatprep.subr.mxu0 0.0
    %160 = vmatpush1.msra.mxu0 0.0
    %161 = vmatprep.subr.mxu0 0.0
    %162 = vmatpush1.msra.mxu0 0.0
    %163 = vmatprep.subr.mxu0 0.0
    %164 = vmatpush1.msra.mxu0 0.0
    %165 = vmatprep.subr.mxu0 0.0
    %166 = vmatpush1.msra.mxu0 0.0
    %167 = vmatprep.subr.mxu0 0.0
    %168 = vmatpush1.msra.mxu0 0.0
    %169 = vmatprep.mubr.f32.mxu0 0.0
    %170 = vmatmul.mubr.f32.gmra.mrb[0].mxu0 %v20
    %v171 = vpop.f32.mrb[0].mxu0
    %v172 = vadd.f32 0.0, %v171
    %v173 = vpop.f32.mrb[0].mxu0
    %174 = vmatprep.mubr.f32.mxu0 0.0
    %175 = vmatmul.mubr.f32.gmra.mrb[0].mxu0 %v23
    %v176 = vpop.f32.mrb[0].mxu0
    %v177 = vadd.f32 0.0, %v176
    %v178 = vpop.f32.mrb[0].mxu0
    %179 = vdwg.mxu0
    %s180 = scalar_lea.vmem %s1, 64
    %v181 = vld [vmem:[%s180] sm:$0xff]
    %v182 = vld [vmem:[%s180 + $0x8] sm:$0xff]
    %v183 = vld [vmem:[%s180 + $0x10] sm:$0xff]
    %v184 = vld [vmem:[%s180 + $0x18] sm:$0xff]
    %185 = vmatprep.subr.mxu0 0.0
    %186 = vmatpush1.msra.mxu0 %v181
    %187 = vmatprep.subr.mxu0 0.0
    %188 = vmatpush1.msra.mxu0 %v182
    %189 = vmatprep.subr.mxu0 0.0
    %190 = vmatpush1.msra.mxu0 %v183
    %191 = vmatprep.subr.mxu0 0.0
    %192 = vmatpush1.msra.mxu0 %v184
    %193 = vmatprep.subr.mxu0 0.0
    %194 = vmatpush1.msra.mxu0 0.0
    %195 = vmatprep.subr.mxu0 0.0
    %196 = vmatpush1.msra.mxu0 0.0
    %197 = vmatprep.subr.mxu0 0.0
    %198 = vmatpush1.msra.mxu0 0.0
    %199 = vmatprep.subr.mxu0 0.0
    %200 = vmatpush1.msra.mxu0 0.0
    %201 = vmatprep.subr.mxu0 0.0
    %202 = vmatpush1.msra.mxu0 0.0
    %203 = vmatprep.subr.mxu0 0.0
    %204 = vmatpush1.msra.mxu0 0.0
    %205 = vmatprep.subr.mxu0 0.0
    %206 = vmatpush1.msra.mxu0 0.0
    %207 = vmatprep.subr.mxu0 0.0
    %208 = vmatpush1.msra.mxu0 0.0
    %209 = vmatprep.subr.mxu0 0.0
    %210 = vmatpush1.msra.mxu0 0.0
    %211 = vmatprep.subr.mxu0 0.0
    %212 = vmatpush1.msra.mxu0 0.0
    %213 = vmatprep.subr.mxu0 0.0
    %214 = vmatpush1.msra.mxu0 0.0
    %215 = vmatprep.subr.mxu0 0.0
    %216 = vmatpush1.msra.mxu0 0.0
    %217 = vmatprep.subr.mxu0 0.0
    %218 = vmatpush1.msra.mxu0 0.0
    %219 = vmatprep.subr.mxu0 0.0
    %220 = vmatpush1.msra.mxu0 0.0
    %221 = vmatprep.subr.mxu0 0.0
    %222 = vmatpush1.msra.mxu0 0.0
    %223 = vmatprep.subr.mxu0 0.0
    %224 = vmatpush1.msra.mxu0 0.0
    %225 = vmatprep.subr.mxu0 0.0
    %226 = vmatpush1.msra.mxu0 0.0
    %227 = vmatprep.subr.mxu0 0.0
    %228 = vmatpush1.msra.mxu0 0.0
    %229 = vmatprep.subr.mxu0 0.0
    %230 = vmatpush1.msra.mxu0 0.0
    %231 = vmatprep.subr.mxu0 0.0
    %232 = vmatpush1.msra.mxu0 0.0
    %233 = vmatprep.subr.mxu0 0.0
    %234 = vmatpush1.msra.mxu0 0.0
    %235 = vmatprep.subr.mxu0 0.0
    %236 = vmatpush1.msra.mxu0 0.0
    %237 = vmatprep.subr.mxu0 0.0
    %238 = vmatpush1.msra.mxu0 0.0
    %239 = vmatprep.subr.mxu0 0.0
    %240 = vmatpush1.msra.mxu0 0.0
    %241 = vmatprep.subr.mxu0 0.0
    %242 = vmatpush1.msra.mxu0 0.0
    %243 = vmatprep.subr.mxu0 0.0
    %244 = vmatpush1.msra.mxu0 0.0
    %245 = vmatprep.subr.mxu0 0.0
    %246 = vmatpush1.msra.mxu0 0.0
    %247 = vmatprep.subr.mxu0 0.0
    %248 = vmatpush1.msra.mxu0 0.0
    %249 = vmatprep.mubr.f32.mxu0 0.0
    %250 = vmatmul.mubr.f32.gmra.mrb[0].mxu0 %v20
    %v251 = vpop.f32.mrb[0].mxu0
    %v252 = vadd.f32 0.0, %v251
    %v253 = vpop.f32.mrb[0].mxu0
    %254 = vmatprep.mubr.f32.mxu0 0.0
    %255 = vmatmul.mubr.f32.gmra.mrb[0].mxu0 %v23
    %v256 = vpop.f32.mrb[0].mxu0
    %v257 = vadd.f32 0.0, %v256
    %v258 = vpop.f32.mrb[0].mxu0
    %259 = vdwg.mxu0
    %vm260 = vcmask 130048
    %v262 = vsel %vm260, %v92, 0
    %v265 = vsel %vm260, %v172, 0
    %267 = vmatprep.subr.mxu0 0.0
    %268 = vmatpush1.xpose.msra.mxu0 %v265
    %269 = vmatprep.subr.mxu0 0.0
    %270 = vmatpush1.xpose.msra.mxu0 0.0
    %271 = vmatprep.subr.mxu0 0.0
    %272 = vmatpush1.xpose.msra.mxu0 0.0
    %273 = vmatprep.subr.mxu0 0.0
    %274 = vmatpush1.xpose.msra.mxu0 0.0
    %275 = vmatprep.subr.mxu0 0.0
    %276 = vmatpush1.xpose.msra.mxu0 0.0
    %277 = vmatprep.subr.mxu0 0.0
    %278 = vmatpush1.xpose.msra.mxu0 0.0
    %279 = vmatprep.subr.mxu0 0.0
    %280 = vmatpush1.xpose.msra.mxu0 0.0
    %281 = vmatprep.subr.mxu0 0.0
    %282 = vmatpush1.xpose.msra.mxu0 0.0
    %283 = vmatprep.subr.mxu0 0.0
    %284 = vmatpush1.xpose.msra.mxu0 0.0
    %285 = vmatprep.subr.mxu0 0.0
    %286 = vmatpush1.xpose.msra.mxu0 0.0
    %287 = vmatprep.subr.mxu0 0.0
    %288 = vmatpush1.xpose.msra.mxu0 0.0
    %289 = vmatprep.subr.mxu0 0.0
    %290 = vmatpush1.xpose.msra.mxu0 0.0
    %291 = vmatprep.subr.mxu0 0.0
    %292 = vmatpush1.xpose.msra.mxu0 0.0
    %293 = vmatprep.subr.mxu0 0.0
    %294 = vmatpush1.xpose.msra.mxu0 0.0
    %295 = vmatprep.subr.mxu0 0.0
    %296 = vmatpush1.xpose.msra.mxu0 0.0
    %297 = vmatprep.subr.mxu0 0.0
    %298 = vmatpush1.xpose.msra.mxu0 0.0
    %299 = vmatprep.subr.mxu0 0.0
    %300 = vmatpush1.xpose.msra.mxu0 0.0
    %301 = vmatprep.subr.mxu0 0.0
    %302 = vmatpush1.xpose.msra.mxu0 0.0
    %303 = vmatprep.subr.mxu0 0.0
    %304 = vmatpush1.xpose.msra.mxu0 0.0
    %305 = vmatprep.subr.mxu0 0.0
    %306 = vmatpush1.xpose.msra.mxu0 0.0
    %307 = vmatprep.subr.mxu0 0.0
    %308 = vmatpush1.xpose.msra.mxu0 0.0
    %309 = vmatprep.subr.mxu0 0.0
    %310 = vmatpush1.xpose.msra.mxu0 0.0
    %311 = vmatprep.subr.mxu0 0.0
    %312 = vmatpush1.xpose.msra.mxu0 0.0
    %313 = vmatprep.subr.mxu0 0.0
    %314 = vmatpush1.xpose.msra.mxu0 0.0
    %315 = vmatprep.subr.mxu0 0.0
    %316 = vmatpush1.xpose.msra.mxu0 0.0
    %317 = vmatprep.subr.mxu0 0.0
    %318 = vmatpush1.xpose.msra.mxu0 0.0
    %319 = vmatprep.subr.mxu0 0.0
    %320 = vmatpush1.xpose.msra.mxu0 0.0
    %321 = vmatprep.subr.mxu0 0.0
    %322 = vmatpush1.xpose.msra.mxu0 0.0
    %323 = vmatprep.subr.mxu0 0.0
    %324 = vmatpush1.xpose.msra.mxu0 0.0
    %325 = vmatprep.subr.mxu0 0.0
    %326 = vmatpush1.xpose.msra.mxu0 0.0
    %327 = vmatprep.subr.mxu0 0.0
    %328 = vmatpush1.xpose.msra.mxu0 0.0
    %329 = vmatprep.subr.mxu0 0.0
    %330 = vmatpush1.xpose.msra.mxu0 0.0
    %331 = vmatprep.mubr.f32.mxu0 0.0
    %332 = vmatmul.mubr.f32.gmra.mrb[0].mxu0 %v262
    %v333 = vpop.f32.mrb[0].mxu0
    %v334 = vadd.f32 0.0, %v333
    %v335 = vpop.f32.mrb[0].mxu0
    %336 = vdwg.mxu0
    %v338 = vsel %vm260, %v97, 0
    %v341 = vsel %vm260, %v177, 0
    %343 = vmatprep.subr.mxu0 0.0
    %344 = vmatpush1.xpose.msra.mxu0 %v341
    %345 = vmatprep.subr.mxu0 0.0
    %346 = vmatpush1.xpose.msra.mxu0 0.0
    %347 = vmatprep.subr.mxu0 0.0
    %348 = vmatpush1.xpose.msra.mxu0 0.0
    %349 = vmatprep.subr.mxu0 0.0
    %350 = vmatpush1.xpose.msra.mxu0 0.0
    %351 = vmatprep.subr.mxu0 0.0
    %352 = vmatpush1.xpose.msra.mxu0 0.0
    %353 = vmatprep.subr.mxu0 0.0
    %354 = vmatpush1.xpose.msra.mxu0 0.0
    %355 = vmatprep.subr.mxu0 0.0
    %356 = vmatpush1.xpose.msra.mxu0 0.0
    %357 = vmatprep.subr.mxu0 0.0
    %358 = vmatpush1.xpose.msra.mxu0 0.0
    %359 = vmatprep.subr.mxu0 0.0
    %360 = vmatpush1.xpose.msra.mxu0 0.0
    %361 = vmatprep.subr.mxu0 0.0
    %362 = vmatpush1.xpose.msra.mxu0 0.0
    %363 = vmatprep.subr.mxu0 0.0
    %364 = vmatpush1.xpose.msra.mxu0 0.0
    %365 = vmatprep.subr.mxu0 0.0
    %366 = vmatpush1.xpose.msra.mxu0 0.0
    %367 = vmatprep.subr.mxu0 0.0
    %368 = vmatpush1.xpose.msra.mxu0 0.0
    %369 = vmatprep.subr.mxu0 0.0
    %370 = vmatpush1.xpose.msra.mxu0 0.0
    %371 = vmatprep.subr.mxu0 0.0
    %372 = vmatpush1.xpose.msra.mxu0 0.0
    %373 = vmatprep.subr.mxu0 0.0
    %374 = vmatpush1.xpose.msra.mxu0 0.0
    %375 = vmatprep.subr.mxu0 0.0
    %376 = vmatpush1.xpose.msra.mxu0 0.0
    %377 = vmatprep.subr.mxu0 0.0
    %378 = vmatpush1.xpose.msra.mxu0 0.0
    %379 = vmatprep.subr.mxu0 0.0
    %380 = vmatpush1.xpose.msra.mxu0 0.0
    %381 = vmatprep.subr.mxu0 0.0
    %382 = vmatpush1.xpose.msra.mxu0 0.0
    %383 = vmatprep.subr.mxu0 0.0
    %384 = vmatpush1.xpose.msra.mxu0 0.0
    %385 = vmatprep.subr.mxu0 0.0
    %386 = vmatpush1.xpose.msra.mxu0 0.0
    %387 = vmatprep.subr.mxu0 0.0
    %388 = vmatpush1.xpose.msra.mxu0 0.0
    %389 = vmatprep.subr.mxu0 0.0
    %390 = vmatpush1.xpose.msra.mxu0 0.0
    %391 = vmatprep.subr.mxu0 0.0
    %392 = vmatpush1.xpose.msra.mxu0 0.0
    %393 = vmatprep.subr.mxu0 0.0
    %394 = vmatpush1.xpose.msra.mxu0 0.0
    %395 = vmatprep.subr.mxu0 0.0
    %396 = vmatpush1.xpose.msra.mxu0 0.0
    %397 = vmatprep.subr.mxu0 0.0
    %398 = vmatpush1.xpose.msra.mxu0 0.0
    %399 = vmatprep.subr.mxu0 0.0
    %400 = vmatpush1.xpose.msra.mxu0 0.0
    %401 = vmatprep.subr.mxu0 0.0
    %402 = vmatpush1.xpose.msra.mxu0 0.0
    %403 = vmatprep.subr.mxu0 0.0
    %404 = vmatpush1.xpose.msra.mxu0 0.0
    %405 = vmatprep.subr.mxu0 0.0
    %406 = vmatpush1.xpose.msra.mxu0 0.0
    %407 = vmatprep.mubr.f32.mxu0 0.0
    %408 = vmatmul.mubr.f32.gmra.mrb[0].mxu0 %v338
    %v409 = vpop.f32.mrb[0].mxu0
    %v410 = vadd.f32 0.0, %v409
    %v411 = vpop.f32.mrb[0].mxu0
    %412 = vdwg.mxu0
    %v413 = vmul.f32 %v334, 0.17677669
    %v414 = vmul.f32 %v410, 0.17677669
    %v415 = vlaneseq
    %v416 = vshrl.u32 %v415, 7
    %v417 = vlaneseq
    %v418 = vand.u32 %v417, 127
    %vm419 = vcmp.le.s32.totalorder %v418, %v416
    %v420 = vsel %vm419, 1, 0
    %vm421 = vcmp.eq.s32.totalorder %v420, 1
    %v422 = vsel %vm421, %v413, -inf
    %v423 = vsel %vm421, %v414, -inf
    %vm424 = vcmask 64512
    %v425 = vsel %vm424, %v422, -inf
    %426 = vmax.xlane.f32.xlu0 %v425
    %v427 = vpop.xlane.xlu0 %426
    %v428 = vsel %vm424, %v423, -inf
    %429 = vmax.xlane.f32.xlu0 %v428
    %v430 = vpop.xlane.xlu0 %429
    %v431 = vsub.f32 %v422, %v427
    %v432 = vsub.f32 %v423, %v430
    %v433 = vmul.f32 %v431, 1.442695
    %v434 = vpow.pop %v433
    %v435 = vmul.f32 %v432, 1.442695
    %v436 = vpow.pop %v435
    %v437 = vsel %vm424, %v434, 0.0
    %438 = vadd.xlane.f32.xlu0 %v437
    %v439 = vpop.xlane.xlu0 %438
    %v440 = vsel %vm424, %v436, 0.0
    %441 = vadd.xlane.f32.xlu0 %v440
    %v442 = vpop.xlane.xlu0 %441
    %v443 = vrcp.pop %v439
    %v444 = vmul.f32 %v434, %v443
    %v445 = vrcp.pop %v442
    %v446 = vmul.f32 %v436, %v445
    %v448 = vsel %vm424, %v444, 0
    %450 = vmatprep.subr.mxu0 0.0
    %451 = vmatpush1.msra.mxu0 %v252
    %452 = vmatprep.subr.mxu0 0.0
    %453 = vmatpush1.msra.mxu0 0.0
    %454 = vmatprep.subr.mxu0 0.0
    %455 = vmatpush1.msra.mxu0 0.0
    %456 = vmatprep.subr.mxu0 0.0
    %457 = vmatpush1.msra.mxu0 0.0
    %458 = vmatprep.subr.mxu0 0.0
    %459 = vmatpush1.msra.mxu0 0.0
    %460 = vmatprep.subr.mxu0 0.0
    %461 = vmatpush1.msra.mxu0 0.0
    %462 = vmatprep.subr.mxu0 0.0
    %463 = vmatpush1.msra.mxu0 0.0
    %464 = vmatprep.subr.mxu0 0.0
    %465 = vmatpush1.msra.mxu0 0.0
    %466 = vmatprep.subr.mxu0 0.0
    %467 = vmatpush1.msra.mxu0 0.0
    %468 = vmatprep.subr.mxu0 0.0
    %469 = vmatpush1.msra.mxu0 0.0
    %470 = vmatprep.subr.mxu0 0.0
    %471 = vmatpush1.msra.mxu0 0.0
    %472 = vmatprep.subr.mxu0 0.0
    %473 = vmatpush1.msra.mxu0 0.0
    %474 = vmatprep.subr.mxu0 0.0
    %475 = vmatpush1.msra.mxu0 0.0
    %476 = vmatprep.subr.mxu0 0.0
    %477 = vmatpush1.msra.mxu0 0.0
    %478 = vmatprep.subr.mxu0 0.0
    %479 = vmatpush1.msra.mxu0 0.0
    %480 = vmatprep.subr.mxu0 0.0
    %481 = vmatpush1.msra.mxu0 0.0
    %482 = vmatprep.subr.mxu0 0.0
    %483 = vmatpush1.msra.mxu0 0.0
    %484 = vmatprep.subr.mxu0 0.0
    %485 = vmatpush1.msra.mxu0 0.0
    %486 = vmatprep.subr.mxu0 0.0
    %487 = vmatpush1.msra.mxu0 0.0
    %488 = vmatprep.subr.mxu0 0.0
    %489 = vmatpush1.msra.mxu0 0.0
    %490 = vmatprep.subr.mxu0 0.0
    %491 = vmatpush1.msra.mxu0 0.0
    %492 = vmatprep.subr.mxu0 0.0
    %493 = vmatpush1.msra.mxu0 0.0
    %494 = vmatprep.subr.mxu0 0.0
    %495 = vmatpush1.msra.mxu0 0.0
    %496 = vmatprep.subr.mxu0 0.0
    %497 = vmatpush1.msra.mxu0 0.0
    %498 = vmatprep.subr.mxu0 0.0
    %499 = vmatpush1.msra.mxu0 0.0
    %500 = vmatprep.subr.mxu0 0.0
    %501 = vmatpush1.msra.mxu0 0.0
    %502 = vmatprep.subr.mxu0 0.0
    %503 = vmatpush1.msra.mxu0 0.0
    %504 = vmatprep.subr.mxu0 0.0
    %505 = vmatpush1.msra.mxu0 0.0
    %506 = vmatprep.subr.mxu0 0.0
    %507 = vmatpush1.msra.mxu0 0.0
    %508 = vmatprep.subr.mxu0 0.0
    %509 = vmatpush1.msra.mxu0 0.0
    %510 = vmatprep.subr.mxu0 0.0
    %511 = vmatpush1.msra.mxu0 0.0
    %512 = vmatprep.subr.mxu0 0.0
    %513 = vmatpush1.msra.mxu0 0.0
    %514 = vmatprep.mubr.f32.mxu0 0.0
    %515 = vmatmul.mubr.f32.gmra.mrb[0].mxu0 %v448
    %v516 = vpop.f32.mrb[0].mxu0
    %v517 = vadd.f32 0.0, %v516
    %v518 = vpop.f32.mrb[0].mxu0
    %519 = vdwg.mxu0
    %v521 = vsel %vm424, %v446, 0
    %523 = vmatprep.subr.mxu0 0.0
    %524 = vmatpush1.msra.mxu0 %v257
    %525 = vmatprep.subr.mxu0 0.0
    %526 = vmatpush1.msra.mxu0 0.0
    %527 = vmatprep.subr.mxu0 0.0
    %528 = vmatpush1.msra.mxu0 0.0
    %529 = vmatprep.subr.mxu0 0.0
    %530 = vmatpush1.msra.mxu0 0.0
    %531 = vmatprep.subr.mxu0 0.0
    %532 = vmatpush1.msra.mxu0 0.0
    %533 = vmatprep.subr.mxu0 0.0
    %534 = vmatpush1.msra.mxu0 0.0
    %535 = vmatprep.subr.mxu0 0.0
    %536 = vmatpush1.msra.mxu0 0.0
    %537 = vmatprep.subr.mxu0 0.0
    %538 = vmatpush1.msra.mxu0 0.0
    %539 = vmatprep.subr.mxu0 0.0
    %540 = vmatpush1.msra.mxu0 0.0
    %541 = vmatprep.subr.mxu0 0.0
    %542 = vmatpush1.msra.mxu0 0.0
    %543 = vmatprep.subr.mxu0 0.0
    %544 = vmatpush1.msra.mxu0 0.0
    %545 = vmatprep.subr.mxu0 0.0
    %546 = vmatpush1.msra.mxu0 0.0
    %547 = vmatprep.subr.mxu0 0.0
    %548 = vmatpush1.msra.mxu0 0.0
    %549 = vmatprep.subr.mxu0 0.0
    %550 = vmatpush1.msra.mxu0 0.0
    %551 = vmatprep.subr.mxu0 0.0
    %552 = vmatpush1.msra.mxu0 0.0
    %553 = vmatprep.subr.mxu0 0.0
    %554 = vmatpush1.msra.mxu0 0.0
    %555 = vmatprep.subr.mxu0 0.0
    %556 = vmatpush1.msra.mxu0 0.0
    %557 = vmatprep.subr.mxu0 0.0
    %558 = vmatpush1.msra.mxu0 0.0
    %559 = vmatprep.subr.mxu0 0.0
    %560 = vmatpush1.msra.mxu0 0.0
    %561 = vmatprep.subr.mxu0 0.0
    %562 = vmatpush1.msra.mxu0 0.0
    %563 = vmatprep.subr.mxu0 0.0
    %564 = vmatpush1.msra.mxu0 0.0
    %565 = vmatprep.subr.mxu0 0.0
    %566 = vmatpush1.msra.mxu0 0.0
    %567 = vmatprep.subr.mxu0 0.0
    %568 = vmatpush1.msra.mxu0 0.0
    %569 = vmatprep.subr.mxu0 0.0
    %570 = vmatpush1.msra.mxu0 0.0
    %571 = vmatprep.subr.mxu0 0.0
    %572 = vmatpush1.msra.mxu0 0.0
    %573 = vmatprep.subr.mxu0 0.0
    %574 = vmatpush1.msra.mxu0 0.0
    %575 = vmatprep.subr.mxu0 0.0
    %576 = vmatpush1.msra.mxu0 0.0
    %577 = vmatprep.subr.mxu0 0.0
    %578 = vmatpush1.msra.mxu0 0.0
    %579 = vmatprep.subr.mxu0 0.0
    %580 = vmatpush1.msra.mxu0 0.0
    %581 = vmatprep.subr.mxu0 0.0
    %582 = vmatpush1.msra.mxu0 0.0
    %583 = vmatprep.subr.mxu0 0.0
    %584 = vmatpush1.msra.mxu0 0.0
    %585 = vmatprep.subr.mxu0 0.0
    %586 = vmatpush1.msra.mxu0 0.0
    %587 = vmatprep.mubr.f32.mxu0 0.0
    %588 = vmatmul.mubr.f32.gmra.mrb[0].mxu0 %v521
    %v589 = vpop.f32.mrb[0].mxu0
    %v590 = vadd.f32 0.0, %v589
    %v591 = vpop.f32.mrb[0].mxu0
    %592 = vdwg.mxu0
    %v593 = vcombine.high %v517, 0.0
    %v595 = vunpack.c.l.s4 1983009808
    %v596 = vunpack.c.0.s8 %v595
    %v597 = vlaneseq
    %v598 = vshrl.u32 %v597, 7
    %v599 = vsub.s32 %v596, %v598
    %v600 = vrot.slane %v517, %v599
    %v602 = vunpack.c.l.s4 1983009808
    %v603 = vunpack.c.0.s8 %v602
    %v604 = vlaneseq
    %v605 = vshrl.u32 %v604, 7
    %v606 = vsub.s32 %v603, %v605
    %v607 = vrot.slane %v593, %v606
    %v608 = vcombine.high %v590, 0.0
    %v610 = vunpack.c.l.s4 1983009808
    %v611 = vunpack.c.0.s8 %v610
    %v612 = vlaneseq
    %v613 = vshrl.u32 %v612, 7
    %v614 = vsub.s32 %v611, %v613
    %v615 = vrot.slane %v590, %v614
    %v617 = vunpack.c.l.s4 1983009808
    %v618 = vunpack.c.0.s8 %v617
    %v619 = vlaneseq
    %v620 = vshrl.u32 %v619, 7
    %v621 = vsub.s32 %v618, %v620
    %v622 = vrot.slane %v608, %v621
    %v623 = vcombine.low %v600, %v615
    %v624 = vcombine.high %v600, %v615
    %v626 = vunpack.c.l.s4 1934713408
    %v627 = vunpack.c.0.s8 %v626
    %v628 = vlaneseq
    %v629 = vshrl.u32 %v628, 7
    %v630 = vsub.s32 %v627, %v629
    %v631 = vrot.slane %v623, %v630
    %v633 = vunpack.c.l.s4 1934713408
    %v634 = vunpack.c.0.s8 %v633
    %v635 = vlaneseq
    %v636 = vshrl.u32 %v635, 7
    %v637 = vsub.s32 %v634, %v636
    %v638 = vrot.slane %v624, %v637
    %v639 = vcombine.low %v607, %v622
    %v640 = vcombine.high %v607, %v622
    %v642 = vunpack.c.l.s4 1934713408
    %v643 = vunpack.c.0.s8 %v642
    %v644 = vlaneseq
    %v645 = vshrl.u32 %v644, 7
    %v646 = vsub.s32 %v643, %v645
    %v647 = vrot.slane %v639, %v646
    %v649 = vunpack.c.l.s4 1934713408
    %v650 = vunpack.c.0.s8 %v649
    %v651 = vlaneseq
    %v652 = vshrl.u32 %v651, 7
    %v653 = vsub.s32 %v650, %v652
    %v654 = vrot.slane %v640, %v653
    %v655 = vcombine.high %v631, 0.0
    %v656 = vcombine.high %v638, 0.0
    %v657 = vcombine.high %v647, 0.0
    %v658 = vcombine.high %v654, 0.0
    %660 = vrot.lane.b32.xlu0 %v655, 16
    %v661 = vpop.permute.xlu0 %660
    %664 = vrot.lane.b32.xlu0 %v638, 32
    %v665 = vpop.permute.xlu0 %664
    %668 = vrot.lane.b32.xlu0 %v656, 48
    %v669 = vpop.permute.xlu0 %668
    %672 = vrot.lane.b32.xlu0 %v647, 64
    %v673 = vpop.permute.xlu0 %672
    %676 = vrot.lane.b32.xlu0 %v657, 80
    %v677 = vpop.permute.xlu0 %676
    %680 = vrot.lane.b32.xlu0 %v654, 96
    %v681 = vpop.permute.xlu0 %680
    %684 = vrot.lane.b32.xlu0 %v658, 112
    %v685 = vpop.permute.xlu0 %684
    %v687 = vsel %vm260, %v631, %v661
    %v688 = vsel %vm18, %v687, %v665
    %vm689 = vcmask 392192
    %v690 = vsel %vm689, %v688, %v669
    %vm691 = vcmask 523264
    %v692 = vsel %vm691, %v690, %v673
    %vm693 = vcmask 654336
    %v694 = vsel %vm693, %v692, %v677
    %vm695 = vcmask 785408
    %v696 = vsel %vm695, %v694, %v681
    %vm697 = vcmask 916480
    %v698 = vsel %vm697, %v696, %v685
    %699 = vst [vmem:[#allocation2] sm:$0x3] %v698
    // Predicated region
    $region10: #{tpu_custom_call.1} parent=1 // pred_check
      _
    $region11: #{tpu_custom_call.1} parent=1 // pred_check_branch
      %701 = sbr.rel (0) target = $region13
    $region12: #{tpu_custom_call.1} parent=1 // pred_region
      %s703 = ssub.s32 32, 32
      %704 = vsyncadd [#allocation3], %s703
      %s706 = sshll.u32 [#allocation2], 4
      %s707 = int_to_ptr.vmem [resolvable:$true] %s706
      %709 = dma.vmem_to_hbm [thread:$0]  %s707, 32, %s2, [#allocation3]
    $region13: #{tpu_custom_call.1} parent=1 // pred_fallthru
      _
    // Predicated region
    $region14: #{tpu_custom_call.1} parent=1 // pred_check
      _
    $region15: #{tpu_custom_call.1} parent=1 // pred_check_branch
      %711 = sbr.rel (0) target = $region17
    $region16: #{tpu_custom_call.1} parent=1 // pred_region
      %712 = dma.done [#allocation3], 32
    $region17: #{tpu_custom_call.1} parent=1 // pred_fallthru
      _
    %713 = vsyncpa [#allocation3], 1

</llo_original>
